<compile_context>
chip_gen: v7x
topology: tpu7x:2x2x1
jax: 0.10.0
libtpu: 0.0.40
codegen_flags: <defaults>
</compile_context>

<pallas_src>
import functools

import numpy as np
import jax
import jax.numpy as jnp
from jax.experimental import pallas as pl
from jax.experimental.pallas import tpu as pltpu


def _round_up(x, m):
    return ((x + m - 1) // m) * m


def _choose_row_tile(n, max_tile=256):
    """Largest TM <= max_tile with N % TM == 0 and TM % 8 == 0; else TM = N."""
    t = min(max_tile, n)
    t -= t % 8
    while t >= 8:
        if n % t == 0:
            return t
        t -= 8
    return n


def _flatnce_kernel(f_row_ref, f_t_ref, pos_ref, out_ref, *,
                    batch_size, temperature):
    i = pl.program_id(0)
    f_row = f_row_ref[...]                       # (TM, D) f32, already normalized
    f_t = f_t_ref[...]                           # (D, W)  f32, normalized + padded
    tm = f_row.shape[0]
    W = f_t.shape[1]

    # --- similarity rows on the MXU: (TM, D) x (D, W) ---
    sim = jnp.dot(f_row, f_t, preferred_element_type=jnp.float32)   # (TM, W)

    # --- (negatives - positives) / temperature ---
    inv_t = 1.0 / temperature
    diff = (sim - pos_ref[...]) * inv_t          # pos (TM, 1) lane-broadcast

    # --- per-row compaction: out[k, m] = diff[k, m + shift], shift in {0,1,2}
    #     shift = (m >= e1) + (m >= e1 + B - 1),  e1 = k mod B
    #     source columns m+shift never exceed N-1 for the valid m < N-2, so the
    #     roll wrap-around only touches padding columns that get sliced away.
    d1 = pltpu.roll(diff, shift=W - 1, axis=1)   # d1[:, m] = diff[:, m+1]
    d2 = pltpu.roll(diff, shift=W - 2, axis=1)   # d2[:, m] = diff[:, m+2]

    k = i * tm + jax.lax.broadcasted_iota(jnp.int32, (tm, W), 0)     # global row
    m = jax.lax.broadcasted_iota(jnp.int32, (tm, W), 1)              # output col
    e1 = jnp.where(k >= batch_size, k - batch_size, k)               # k mod B
    s1 = m >= e1
    s2 = m >= (e1 + batch_size - 1)              # implies s1

    sel = jnp.where(s2, d2, jnp.where(s1, d1, diff))                 # (TM, W)
    out_ref[...] = sel.astype(out_ref.dtype)     # full lane-dense store


def contrastive_loss_forward(z_i, z_j, temperature=0.1, row_tile=None):
    """Returns (logits, labels) matching FlatNCE.forward / ContrastiveLoss.forward."""
    B, D = z_i.shape
    N = 2 * B
    M = N - 2
    W = _round_up(N, 128)                        # lane-dense output / RHS width

    # ---- wrapper pre-pass (O(N*D) glue): concat, normalize once, positives ----
    f = jnp.concatenate([z_i, z_j], axis=0)
    if f.dtype != jnp.float32:
        f = f.astype(jnp.float32)
    norm = jnp.sqrt(jnp.sum(f * f, axis=1, keepdims=True))
    fn = f / jnp.maximum(norm, 1e-12)            # F.normalize(..., dim=1)

    # positives: pos[k] = <fn[k], fn[(k+B) % N]>  -> same value for k and k+B
    pos_half = jnp.sum(fn[:B] * fn[B:], axis=1, keepdims=True)       # (B, 1)
    pos = jnp.concatenate([pos_half, pos_half], axis=0)              # (N, 1)

    # pre-transposed, lane-padded RHS for the MXU
    fn_t = fn.T                                                       # (D, N)
    if W > N:
        fn_t = jnp.pad(fn_t, ((0, 0), (0, W - N)))                    # (D, W)

    # ---- row tiling ----
    tm = _choose_row_tile(N) if row_tile is None else row_tile
    assert N % tm == 0 and (tm % 8 == 0 or tm == N), (N, tm)
    grid = (N // tm,)

    kernel = functools.partial(_flatnce_kernel,
                               batch_size=B, temperature=float(temperature))

    out = pl.pallas_call(
        kernel,
        out_shape=jax.ShapeDtypeStruct((N, W), jnp.float32),
        grid=grid,
        in_specs=[
            pl.BlockSpec((tm, D), lambda i: (i, 0)),    # row block of features
            pl.BlockSpec((D, W), lambda i: (0, 0)),     # full RHS, stays resident
            pl.BlockSpec((tm, 1), lambda i: (i, 0)),    # positives column
        ],
        out_specs=pl.BlockSpec((tm, W), lambda i: (i, 0)),
        compiler_params=pltpu.CompilerParams(
            dimension_semantics=("parallel",),
            vmem_limit_bytes=32 * 1024 * 1024,          # safe on v5e/v6e/v7x
        ),
    )(fn, fn_t, pos)

    logits = out[:, :M]                                  # drop lane padding
    # labels are identically zero (int32; torch used int64)
    labels = jnp.zeros((N,), dtype=jnp.int32)
    return logits, labels


def _reference(z_i, z_j, temperature=0.1):
    """Pure-JAX reference mirroring the PyTorch code, for verification."""
    B = z_i.shape[0]
    N = 2 * B
    f = jnp.concatenate([z_i, z_j], axis=0).astype(jnp.float32)
    f = f / jnp.maximum(jnp.linalg.norm(f, axis=1, keepdims=True), 1e-12)
    sim = f @ f.T
    pos_idx = (np.arange(N) + B) % N
    pos = sim[np.arange(N), pos_idx][:, None]
    neg_cols = np.array([[j for j in range(N) if j != k and j != (k + B) % N]
                         for k in range(N)], dtype=np.int32)
    neg = jnp.take_along_axis(sim, jnp.asarray(neg_cols), axis=1)
    logits = (neg - pos) / temperature
    labels = jnp.zeros((N,), dtype=jnp.int32)
    return logits, labels


if __name__ == "__main__":
    key = jax.random.PRNGKey(0)
    k1, k2 = jax.random.split(key)

    # (B, D, row_tile): first config exercises a multi-tile grid (N=16, TM=8),
    # second exercises the TM == N single-tile fallback (N=8).
    configs = [(8, 32, 8), (4, 32, None)]
    for B, D, row_tile in configs:
        z_i = jax.random.normal(k1, (B, D), dtype=jnp.float32)
        z_j = jax.random.normal(k2, (B, D), dtype=jnp.float32)

        logits, labels = contrastive_loss_forward(z_i, z_j, temperature=0.1,
                                                  row_tile=row_tile)
        jax.block_until_ready((logits, labels))

        ref_logits, ref_labels = _reference(z_i, z_j, temperature=0.1)
        np.testing.assert_allclose(np.asarray(logits), np.asarray(ref_logits),
                                   rtol=1e-5, atol=1e-5)
        np.testing.assert_array_equal(np.asarray(labels), np.asarray(ref_labels))

    print("KERNEL_OK")
</pallas_src>

<mosaic_0001>
module attributes {stable_mosaic.version = 11 : i64} {
  func.func @_flatnce_kernel(%arg0: i32, %arg1: memref<8x32xf32, #tpu.memory_space<vmem>>, %arg2: memref<32x128xf32, #tpu.memory_space<vmem>>, %arg3: memref<8x1xf32, #tpu.memory_space<vmem>>, %arg4: memref<8x128xf32, #tpu.memory_space<vmem>>) attributes {dimension_semantics = [#tpu.dimension_semantics<parallel>], iteration_bounds = array<i64: 2>, scalar_prefetch = 0 : i64, scratch_operands = 0 : i64, tpu.core_type = #tpu.core_type<tc>, window_params = [{transform_indices = @transform_0, window_bounds = array<i64: 8, 32>}, {pipeline_mode = #tpu.pipeline_mode<synchronous>, transform_indices = @transform_1, window_bounds = array<i64: 32, 128>}, {transform_indices = @transform_2, window_bounds = array<i64: 8, 1>}, {transform_indices = @transform_3, window_bounds = array<i64: 8, 128>}]} {
    %c0 = arith.constant 0 : index
    %c0_0 = arith.constant 0 : index
    %0 = vector.load %arg1[%c0, %c0_0] : memref<8x32xf32, #tpu.memory_space<vmem>>, vector<8x32xf32>
    %c0_1 = arith.constant 0 : index
    %c0_2 = arith.constant 0 : index
    %1 = vector.load %arg2[%c0_1, %c0_2] : memref<32x128xf32, #tpu.memory_space<vmem>>, vector<32x128xf32>
    %cst = arith.constant dense<0.000000e+00> : vector<8x128xf32>
    %2 = tpu.matmul %0, %1, %cst {dimension_numbers = #tpu.dot_dimension_numbers<[1], [0], [0], [1], [0, 0, 1, 1], [], []>} : vector<8x32xf32>, vector<32x128xf32>, vector<8x128xf32> -> vector<8x128xf32>
    %c0_3 = arith.constant 0 : index
    %c0_4 = arith.constant 0 : index
    %3 = vector.load %arg3[%c0_3, %c0_4] : memref<8x1xf32, #tpu.memory_space<vmem>>, vector<8x1xf32>
    %4 = vector.broadcast %3 : vector<8x1xf32> to vector<8x128xf32>
    %5 = arith.subf %2, %4 : vector<8x128xf32>
    %cst_5 = arith.constant 1.000000e+01 : f32
    %6 = vector.broadcast %cst_5 : f32 to vector<8x128xf32>
    %7 = arith.mulf %5, %6 : vector<8x128xf32>
    %c127_i32 = arith.constant 127 : i32
    %8 = tpu.dynamic_rotate %7 by %c127_i32 dim 1 : vector<8x128xf32>, i32 -> vector<8x128xf32>
    %c126_i32 = arith.constant 126 : i32
    %9 = tpu.dynamic_rotate %7 by %c126_i32 dim 1 : vector<8x128xf32>, i32 -> vector<8x128xf32>
    %c8_i32 = arith.constant 8 : i32
    %10 = arith.muli %arg0, %c8_i32 : i32
    %11 = tpu.iota {dimensions = array<i32: 0>} : vector<8x128xi32>
    %12 = vector.broadcast %10 : i32 to vector<8x128xi32>
    %13 = arith.addi %12, %11 : vector<8x128xi32>
    %14 = tpu.iota {dimensions = array<i32: 1>} : vector<8x128xi32>
    %c8_i32_6 = arith.constant 8 : i32
    %15 = vector.broadcast %c8_i32_6 : i32 to vector<8x128xi32>
    %16 = arith.cmpi sge, %13, %15 : vector<8x128xi32>
    %c8_i32_7 = arith.constant 8 : i32
    %17 = vector.broadcast %c8_i32_7 : i32 to vector<8x128xi32>
    %18 = arith.subi %13, %17 : vector<8x128xi32>
    %19 = arith.select %16, %18, %13 : vector<8x128xi1>, vector<8x128xi32>
    %20 = arith.cmpi sge, %14, %19 : vector<8x128xi32>
    %c8_i32_8 = arith.constant 8 : i32
    %21 = vector.broadcast %c8_i32_8 : i32 to vector<8x128xi32>
    %22 = arith.addi %19, %21 : vector<8x128xi32>
    %c1_i32 = arith.constant 1 : i32
    %23 = vector.broadcast %c1_i32 : i32 to vector<8x128xi32>
    %24 = arith.subi %22, %23 : vector<8x128xi32>
    %25 = arith.cmpi sge, %14, %24 : vector<8x128xi32>
    %26 = arith.select %20, %8, %7 : vector<8x128xi1>, vector<8x128xf32>
    %27 = arith.select %25, %9, %26 : vector<8x128xi1>, vector<8x128xf32>
    %c0_9 = arith.constant 0 : index
    %c0_10 = arith.constant 0 : index
    %28 = vector.load %arg4[%c0_9, %c0_10] : memref<8x128xf32, #tpu.memory_space<vmem>>, vector<8x128xf32>
    tpu.vector_store %arg4[%c0_9, %c0_10], %27 {strides = array<i32>} : memref<8x128xf32, #tpu.memory_space<vmem>>, vector<8x128xf32>,
    return
  }
  func.func @transform_0(%arg0: i32) -> (i32, i32) {
    %c0_i32 = arith.constant 0 : i32
    %c0_i32_0 = arith.constant 0 : i32
    return %arg0, %c0_i32 : i32, i32
  }
  func.func @transform_1(%arg0: i32) -> (i32, i32) {
    %c0_i32 = arith.constant 0 : i32
    %c0_i32_0 = arith.constant 0 : i32
    %c0_i32_1 = arith.constant 0 : i32
    return %c0_i32, %c0_i32_0 : i32, i32
  }
  func.func @transform_2(%arg0: i32) -> (i32, i32) {
    %c0_i32 = arith.constant 0 : i32
    %c0_i32_0 = arith.constant 0 : i32
    return %arg0, %c0_i32 : i32, i32
  }
  func.func @transform_3(%arg0: i32) -> (i32, i32) {
    %c0_i32 = arith.constant 0 : i32
    %c0_i32_0 = arith.constant 0 : i32
    return %arg0, %c0_i32 : i32, i32
  }
}

</mosaic_0001>

<llo_original>
// kernel: tpu_custom_call.1
$region0: #{tpu_custom_call.1}
  #allocation0 [shape = 'u32[]', space=smem, size = 0x4, offset = 0x4, fixed_abs, tag = 'smem constant byte address 0x4 - core index']
  #allocation1 [shape = 'u32[144,128]{1,0:T(1,128)}', space=vmem, size = 0x12000, scoped, tag = 'internal scratch']
  %s0 = inlined_call_operand.vmem [shape: f32[16,32], index: 0, kind: input, shape index: {}]
  %s1 = inlined_call_operand.hbm [shape: f32[32,128], index: 1, kind: input, shape index: {}]
  %s2 = inlined_call_operand.vmem [shape: f32[16,1], index: 2, kind: input, shape index: {}]
  %s3 = inlined_call_operand.hbm [shape: f32[16,128], index: 3, kind: output, shape index: {}]
  %s4 = sld [smem:[#allocation0]]
  $region49: #{tpu_custom_call.1} parent=0
    _
  %s6 = ssub.s32 1, %s4
  %s7 = scalar_select 0, %s6, %s4
  $region1: #{tpu_custom_call.1} parent=0
    #allocation2 [shape = 'u8[16384]{0}', space=vmem, size = 0x4000, scoped, tag = 'input window, operand 1, single buffered']
    #allocation3 [shape = 's32[2]{0}', space=sflag, size = 0x8, scoped, tag = 'scoped memory for tpu_custom_call.1']
    #allocation4 [shape = 's32[2]{0}', space=sflag, size = 0x8, scoped, tag = 'scoped memory for tpu_custom_call.1']
    #allocation5 [shape = 'u8[8192]{0}', space=vmem, size = 0x2000, scoped, tag = 'output window, operand 0']
    %8 = vsyncpa [#allocation3], 0
    %9 = vsyncpa [#allocation4], 0
    %s10 = scalar_lea.sflag [#allocation4], 1
    %11 = vsyncpa %s10, 0
    loop: start=0, step=1, limit=4
    $region2: #{tpu_custom_call.1} parent=1 // loop_pre_header
      _
    $region3: #{tpu_custom_call.1} parent=1 // loop_header
      %s13 = sphi 0, %s17
      %p14 = scmp.ge.s32.totalorder %s13, 4
      %s23 = sphi 0, %s25
      %s26 = sphi 0, %s23
      %s27 = sphi 0, %s26
      %s43 = sphi 0, %s27
      %s47 = sphi 0, %s47
      %s49 = sphi 0, %s47
      %s50 = sphi 0, %s49
      %s64 = sphi 0, %s50
      %s70 = sphi 0, %s72
      %s73 = sphi 0, %s70
      %s74 = sphi 0, %s73
      %s90 = sphi 0, %s74
      %s96 = sphi 0, %s98
      %s99 = sphi 0, %s96
      %s100 = sphi 0, %s99
      %s116 = sphi 0, %s100
    $region4: #{tpu_custom_call.1} parent=1 // loop_header_branch
      %16 = sbr.rel (%p14) target = $region8
    $region5: #{tpu_custom_call.1} parent=1 // loop_body
      %s18 = ssub.s32 %s13, 1
      %s19 = ssub.s32 %s13, 2
      %s20 = sadd.s32 %s13, 1
      %s21 = ssub.s32 %s13, %s20
      %p22 = scmp.eq.s32.totalorder %s21, 0
      %s24 = sadd.s32 %s23, 1
      %s25 = scalar_select %p22, %s23, %s24
      %p28 = pneg %p22
      %p29 = scmp.eq.s32.totalorder %s13, 1
      %p30 = por %p28, %p29
      %p31 = scmp.ne.s32.totalorder %s23, %s26
      %p32 = scmp.eq.s32.totalorder %s13, 0
      %p33 = por %p31, %p32
      %p34 = scmp.ne.s32.totalorder %s23, %s26
      %p35 = scmp.eq.s32.totalorder %s18, 1
      %p36 = por %p34, %p35
      %p37 = scmp.ne.s32.totalorder %s26, %s27
      %p38 = scmp.eq.s32.totalorder %s18, 0
      %p39 = por %p37, %p38
      %p40 = scmp.ne.s32.totalorder %s26, %s27
      %p41 = scmp.eq.s32.totalorder %s19, 1
      %p42 = por %p40, %p41
      %p44 = scmp.ne.s32.totalorder %s27, %s43
      %p45 = scmp.eq.s32.totalorder %s19, 0
      %p46 = por %p44, %p45
      %s48 = sadd.s32 %s47, 1
      %p51 = scmp.eq.s32.totalorder %s13, 1
      %p52 = scmp.ne.s32.totalorder %s47, %s49
      %p53 = scmp.eq.s32.totalorder %s13, 0
      %p54 = por %p52, %p53
      %p55 = scmp.ne.s32.totalorder %s47, %s49
      %p56 = scmp.eq.s32.totalorder %s18, 1
      %p57 = por %p55, %p56
      %p58 = scmp.ne.s32.totalorder %s49, %s50
      %p59 = scmp.eq.s32.totalorder %s18, 0
      %p60 = por %p58, %p59
      %p61 = scmp.ne.s32.totalorder %s49, %s50
      %p62 = scmp.eq.s32.totalorder %s19, 1
      %p63 = por %p61, %p62
      %p65 = scmp.ne.s32.totalorder %s50, %s64
      %p66 = scmp.eq.s32.totalorder %s19, 0
      %p67 = por %p65, %p66
      %s68 = ssub.s32 %s13, %s20
      %p69 = scmp.eq.s32.totalorder %s68, 0
      %s71 = sadd.s32 %s70, 1
      %s72 = scalar_select %p69, %s70, %s71
      %p75 = pneg %p69
      %p76 = scmp.eq.s32.totalorder %s13, 1
      %p77 = por %p75, %p76
      %p78 = scmp.ne.s32.totalorder %s70, %s73
      %p79 = scmp.eq.s32.totalorder %s13, 0
      %p80 = por %p78, %p79
      %p81 = scmp.ne.s32.totalorder %s70, %s73
      %p82 = scmp.eq.s32.totalorder %s18, 1
      %p83 = por %p81, %p82
      %p84 = scmp.ne.s32.totalorder %s73, %s74
      %p85 = scmp.eq.s32.totalorder %s18, 0
      %p86 = por %p84, %p85
      %p87 = scmp.ne.s32.totalorder %s73, %s74
      %p88 = scmp.eq.s32.totalorder %s19, 1
      %p89 = por %p87, %p88
      %p91 = scmp.ne.s32.totalorder %s74, %s90
      %p92 = scmp.eq.s32.totalorder %s19, 0
      %p93 = por %p91, %p92
      %s94 = ssub.s32 %s13, %s20
      %p95 = scmp.eq.s32.totalorder %s94, 0
      %s97 = sadd.s32 %s96, 1
      %s98 = scalar_select %p95, %s96, %s97
      %p101 = pneg %p95
      %p102 = scmp.eq.s32.totalorder %s13, 1
      %p103 = por %p101, %p102
      %p104 = scmp.ne.s32.totalorder %s96, %s99
      %p105 = scmp.eq.s32.totalorder %s13, 0
      %p106 = por %p104, %p105
      %p107 = scmp.ne.s32.totalorder %s96, %s99
      %p108 = scmp.eq.s32.totalorder %s18, 1
      %p109 = por %p107, %p108
      %p110 = scmp.ne.s32.totalorder %s99, %s100
      %p111 = scmp.eq.s32.totalorder %s18, 0
      %p112 = por %p110, %p111
      %p113 = scmp.ne.s32.totalorder %s99, %s100
      %p114 = scmp.eq.s32.totalorder %s19, 1
      %p115 = por %p113, %p114
      %p117 = scmp.ne.s32.totalorder %s100, %s116
      %p118 = scmp.eq.s32.totalorder %s19, 0
      %p119 = por %p117, %p118
      %p120 = scmp.le.s32.totalorder 1, %s13
      %p121 = scmp.lt.s32.totalorder %s13, 3
      %p122 = pnand %p120, %p121
      %p123 = pneg %p122
      // Predicated region
      $region9: #{tpu_custom_call.1} parent=5 // pred_check
        _
      $region10: #{tpu_custom_call.1} parent=5 // pred_check_branch
        %125 = sbr.rel (%p122) target = $region12
      $region11: #{tpu_custom_call.1} parent=5 // pred_region
        %s126 = ssub.s32 %s13, 1
        // Predicated region
        $region13: #{tpu_custom_call.1} parent=11 // pred_check
          %p127 = pneg %p60
        $region14: #{tpu_custom_call.1} parent=11 // pred_check_branch
          %129 = sbr.rel (%p127) target = $region16
        $region15: #{tpu_custom_call.1} parent=11 // pred_region
          %s131 = ssub.s32 512, 512
          %132 = vsyncadd [#allocation3], %s131
          %s133 = sshll.u32 [#allocation2], 4
          %s134 = int_to_ptr.vmem [resolvable:$true] %s133
          %139 = dma.hbm_to_vmem [thread:$0]  %s1, 512, %s134, [#allocation3], 128, 128, 8
        $region16: #{tpu_custom_call.1} parent=11 // pred_fallthru
          _
      $region12: #{tpu_custom_call.1} parent=5 // pred_fallthru
        _
      %p140 = scmp.lt.s32.totalorder %s13, 2
      // Predicated region
      $region17: #{tpu_custom_call.1} parent=5 // pred_check
        %p141 = pneg %p140
      $region18: #{tpu_custom_call.1} parent=5 // pred_check_branch
        %143 = sbr.rel (%p141) target = $region20
      $region19: #{tpu_custom_call.1} parent=5 // pred_region
        // Predicated region
        $region21: #{tpu_custom_call.1} parent=19 // pred_check
          %p144 = pneg %p33
        $region22: #{tpu_custom_call.1} parent=19 // pred_check_branch
          %146 = sbr.rel (%p144) target = $region24
        $region23: #{tpu_custom_call.1} parent=19 // pred_region
          %p147 = scmp.lt.s32.totalorder %s13, 1
          %s148 = scalar_select %p147, %s13, 1
          %s149 = smul.addr %s148, 8
          %s150 = scalar_lea.vmem %s0, %s149
        $region24: #{tpu_custom_call.1} parent=19 // pred_fallthru
          _
        // Predicated region
        $region25: #{tpu_custom_call.1} parent=19 // pred_check
          %p151 = pneg %p80
        $region26: #{tpu_custom_call.1} parent=19 // pred_check_branch
          %153 = sbr.rel (%p151) target = $region28
        $region27: #{tpu_custom_call.1} parent=19 // pred_region
          %p154 = scmp.lt.s32.totalorder %s13, 1
          %s155 = scalar_select %p154, %s13, 1
          %s156 = smul.addr %s155, 8
          %s157 = scalar_lea.vmem %s2, %s156
        $region28: #{tpu_custom_call.1} parent=19 // pred_fallthru
          _
      $region20: #{tpu_custom_call.1} parent=5 // pred_fallthru
        _
      %p158 = scmp.le.s32.totalorder 1, %s13
      %p159 = scmp.lt.s32.totalorder %s13, 3
      %p160 = pnand %p158, %p159
      %p161 = pneg %p160
      // Predicated region
      $region29: #{tpu_custom_call.1} parent=5 // pred_check
        _
      $region30: #{tpu_custom_call.1} parent=5 // pred_check_branch
        %163 = sbr.rel (%p160) target = $region32
      $region31: #{tpu_custom_call.1} parent=5 // pred_region
        %s164 = ssub.s32 %s13, 1
        // Predicated region
        $region33: #{tpu_custom_call.1} parent=31 // pred_check
          %p165 = pneg %p60
        $region34: #{tpu_custom_call.1} parent=31 // pred_check_branch
          %167 = sbr.rel (%p165) target = $region36
        $region35: #{tpu_custom_call.1} parent=31 // pred_region
          %168 = dma.done [#allocation3], 512
        $region36: #{tpu_custom_call.1} parent=31 // pred_fallthru
          _
        %p169 = scmp.lt.s32.totalorder %s18, 1
        %s170 = scalar_select %p169, %s18, 1
        %s171 = smul.addr %s170, 8
        %s172 = scalar_lea.vmem %s0, %s171
        %p173 = pneg %p39
        %p174 = pneg %p36
        %p175 = pneg %p60
        %p176 = pneg %p57
        %p177 = scmp.lt.s32.totalorder %s18, 1
        %s178 = scalar_select %p177, %s18, 1
        %s179 = smul.addr %s178, 8
        %s180 = scalar_lea.vmem %s2, %s179
        %p181 = pneg %p86
        %p182 = pneg %p83
        %p183 = pneg %p112
        %p184 = pneg %p109
        %s185 = sand.u32 %s99, 1
        %s186 = scalar_lea.sflag [#allocation4], %s185
        %s187 = sand.u32 %s99, 1
        %s188 = smul.addr %s187, 8
        %s189 = scalar_lea.vmem [#allocation5], %s188
        %p190 = scmp.lt.s32.totalorder %s18, 1
        %s191 = scalar_select %p190, %s18, 1
        %s192 = smul.addr %s191, 8
        %s193 = scalar_lea.vmem %s0, %s192
        %p194 = scmp.lt.s32.totalorder %s18, 1
        %s195 = scalar_select %p194, %s18, 1
        %s196 = smul.addr %s195, 8
        %s197 = scalar_lea.vmem %s2, %s196
        %v198 = vld [vmem:[%s193] sm:$0xff]
        %v199 = vld [vmem:[#allocation2] sm:$0xff]
        %v200 = vld [vmem:[#allocation2 + $0x8] sm:$0xff]
        %v201 = vld [vmem:[#allocation2 + $0x10] sm:$0xff]
        %v202 = vld [vmem:[#allocation2 + $0x18] sm:$0xff]
        %vm203 = vcmask 261120
        %v205 = vsel %vm203, %v198, 0
        %207 = vmatprep.subr.mxu0 0.0
        %208 = vmatpush1.msra.mxu0 %v199
        %209 = vmatprep.subr.mxu0 0.0
        %210 = vmatpush1.msra.mxu0 %v200
        %211 = vmatprep.subr.mxu0 0.0
        %212 = vmatpush1.msra.mxu0 %v201
        %213 = vmatprep.subr.mxu0 0.0
        %214 = vmatpush1.msra.mxu0 %v202
        %215 = vmatprep.subr.mxu0 0.0
        %216 = vmatpush1.msra.mxu0 0.0
        %217 = vmatprep.subr.mxu0 0.0
        %218 = vmatpush1.msra.mxu0 0.0
        %219 = vmatprep.subr.mxu0 0.0
        %220 = vmatpush1.msra.mxu0 0.0
        %221 = vmatprep.subr.mxu0 0.0
        %222 = vmatpush1.msra.mxu0 0.0
        %223 = vmatprep.subr.mxu0 0.0
        %224 = vmatpush1.msra.mxu0 0.0
        %225 = vmatprep.subr.mxu0 0.0
        %226 = vmatpush1.msra.mxu0 0.0
        %227 = vmatprep.subr.mxu0 0.0
        %228 = vmatpush1.msra.mxu0 0.0
        %229 = vmatprep.subr.mxu0 0.0
        %230 = vmatpush1.msra.mxu0 0.0
        %231 = vmatprep.subr.mxu0 0.0
        %232 = vmatpush1.msra.mxu0 0.0
        %233 = vmatprep.subr.mxu0 0.0
        %234 = vmatpush1.msra.mxu0 0.0
        %235 = vmatprep.subr.mxu0 0.0
        %236 = vmatpush1.msra.mxu0 0.0
        %237 = vmatprep.subr.mxu0 0.0
        %238 = vmatpush1.msra.mxu0 0.0
        %239 = vmatprep.subr.mxu0 0.0
        %240 = vmatpush1.msra.mxu0 0.0
        %241 = vmatprep.subr.mxu0 0.0
        %242 = vmatpush1.msra.mxu0 0.0
        %243 = vmatprep.subr.mxu0 0.0
        %244 = vmatpush1.msra.mxu0 0.0
        %245 = vmatprep.subr.mxu0 0.0
        %246 = vmatpush1.msra.mxu0 0.0
        %247 = vmatprep.subr.mxu0 0.0
        %248 = vmatpush1.msra.mxu0 0.0
        %249 = vmatprep.subr.mxu0 0.0
        %250 = vmatpush1.msra.mxu0 0.0
        %251 = vmatprep.subr.mxu0 0.0
        %252 = vmatpush1.msra.mxu0 0.0
        %253 = vmatprep.subr.mxu0 0.0
        %254 = vmatpush1.msra.mxu0 0.0
        %255 = vmatprep.subr.mxu0 0.0
        %256 = vmatpush1.msra.mxu0 0.0
        %257 = vmatprep.subr.mxu0 0.0
        %258 = vmatpush1.msra.mxu0 0.0
        %259 = vmatprep.subr.mxu0 0.0
        %260 = vmatpush1.msra.mxu0 0.0
        %261 = vmatprep.subr.mxu0 0.0
        %262 = vmatpush1.msra.mxu0 0.0
        %263 = vmatprep.subr.mxu0 0.0
        %264 = vmatpush1.msra.mxu0 0.0
        %265 = vmatprep.subr.mxu0 0.0
        %266 = vmatpush1.msra.mxu0 0.0
        %267 = vmatprep.subr.mxu0 0.0
        %268 = vmatpush1.msra.mxu0 0.0
        %269 = vmatprep.subr.mxu0 0.0
        %270 = vmatpush1.msra.mxu0 0.0
        %271 = vmatprep.mubr.f32.mxu0 0.0
        %272 = vmatmul.mubr.f32.gmra.mrb[0].mxu0 %v205
        %v273 = vpop.f32.mrb[0].mxu0
        %v274 = vadd.f32 0.0, %v273
        %v275 = vpop.f32.mrb[0].mxu0
        %276 = vdwg.mxu0
        %v277 = vld [vmem:[%s197] sm:$0xff]
        %279 = vset.pattern.permute.xlu0 0
        %280 = vperm.xlu0 %279, %v277
        %v281 = vpop.permute.xlu0 %280
        %v283 = vsub.f32 %v274, %v281
        %v284 = vmul.f32 %v283, 10.0
        %285 = vrot.lane.b32.xlu0 %v284, 127
        %v286 = vpop.permute.xlu0 %285
        %287 = vrot.lane.b32.xlu0 %v284, 126
        %v288 = vpop.permute.xlu0 %287
        %s289 = smul.u32 %s18, 8
        %v290 = vlaneseq
        %v291 = vshrl.u32 %v290, 7
        %v292 = vstv %s289
        %v293 = vadd.s32 %v292, %v291
        %v294 = vlaneseq
        %v295 = vand.u32 %v294, 127
        %vm296 = vcmp.ge.s32.totalorder %v293, 8
        %v297 = vsub.s32 %v293, 8
        %v298 = vsel %vm296, %v297, %v293
        %vm299 = vcmp.ge.s32.totalorder %v295, %v298
        %v300 = vadd.s32 %v298, 8
        %v301 = vsub.s32 %v300, 1
        %vm302 = vcmp.ge.s32.totalorder %v295, %v301
        %v303 = vsel %vm299, %v286, %v284
        %v304 = vsel %vm302, %v288, %v303
        %305 = vst [vmem:[%s189] sm:$0xff] %v304
        %s306 = sand.u32 %s99, 1
        %s307 = scalar_lea.sflag [#allocation4], %s306
        %s308 = sand.u32 %s99, 1
        %s309 = smul.addr %s308, 8
        %s310 = scalar_lea.vmem [#allocation5], %s309
        // Predicated region
        $region37: #{tpu_custom_call.1} parent=31 // pred_check
          %p311 = pneg %p109
        $region38: #{tpu_custom_call.1} parent=31 // pred_check_branch
          %313 = sbr.rel (%p311) target = $region40
        $region39: #{tpu_custom_call.1} parent=31 // pred_region
          %s315 = ssub.s32 128, 128
          %316 = vsyncadd %s307, %s315
          %s317 = smul.addr %s18, 128
          %s318 = scalar_lea.hbm %s3, %s317
          %s320 = sshll.u32 %s310, 4
          %s321 = int_to_ptr.vmem [resolvable:$true] %s320
          %323 = dma.vmem_to_hbm [thread:$0]  %s321, 128, %s318, %s307
        $region40: #{tpu_custom_call.1} parent=31 // pred_fallthru
          _
      $region32: #{tpu_custom_call.1} parent=5 // pred_fallthru
        _
      %p324 = scmp.le.s32.totalorder 2, %s13
      // Predicated region
      $region41: #{tpu_custom_call.1} parent=5 // pred_check
        %p325 = pneg %p324
      $region42: #{tpu_custom_call.1} parent=5 // pred_check_branch
        %327 = sbr.rel (%p325) target = $region44
      $region43: #{tpu_custom_call.1} parent=5 // pred_region
        %s328 = ssub.s32 %s13, 2
        // Predicated region
        $region45: #{tpu_custom_call.1} parent=43 // pred_check
          %p329 = pneg %p115
        $region46: #{tpu_custom_call.1} parent=43 // pred_check_branch
          %331 = sbr.rel (%p329) target = $region48
        $region47: #{tpu_custom_call.1} parent=43 // pred_region
          %s332 = sand.u32 %s100, 1
          %s333 = scalar_lea.sflag [#allocation4], %s332
          %s334 = sand.u32 %s100, 1
          %s335 = smul.addr %s334, 8
          %s336 = scalar_lea.vmem [#allocation5], %s335
          %337 = dma.done %s333, 128
        $region48: #{tpu_custom_call.1} parent=43 // pred_fallthru
          _
      $region44: #{tpu_custom_call.1} parent=5 // pred_fallthru
        _
    $region6: #{tpu_custom_call.1} parent=1 // loop_footer
      %s17 = sadd.s32 1, %s13
    $region7: #{tpu_custom_call.1} parent=1 // loop_footer_branch
      %12 = sbr.rel target = $region3
    $region8: #{tpu_custom_call.1} parent=1 // loop_exit
      _
    %338 = vsyncpa [#allocation3], 1
    %s339 = scalar_lea.sflag [#allocation3], 1
    %340 = vsyncpa %s339, 1
    %341 = vsyncpa [#allocation4], 1
    %s342 = scalar_lea.sflag [#allocation4], 1
    %343 = vsyncpa %s342, 1

</llo_original>
